<compile_context>
chip_gen: v6e
topology: v6e:2x2x1
jax: 0.10.0
libtpu: 0.0.40
codegen_flags: <defaults>
</compile_context>

<pallas_src>
import functools
import math

import jax
import jax.numpy as jnp
from jax.experimental import pallas as pl
from jax.experimental.pallas import tpu as pltpu


def _focal_loss_kernel(x_ref, t_ref, o_ref, acc_ref, *, loss_type, n_inner,
                       rows, n_valid_rows, needs_mask):
    i = pl.program_id(0)   # super-block (parallel)
    j = pl.program_id(1)   # reduction step within the super-block

    @pl.when(j == 0)
    def _():
        acc_ref[...] = jnp.zeros_like(acc_ref)

    n_batch = x_ref.shape[0]

    if needs_mask:
        # Global row index of every element in this block; zero out d for rows beyond
        # the real extent BEFORE it feeds the softmax (OOB garbage -> exp -> NaN risk).
        row0 = (i * n_inner + j) * rows
        local = jax.lax.broadcasted_iota(jnp.int32, (rows, 128), 0)
        in_bounds = (row0 + local) < n_valid_rows

    # Pass 1: d_n = |x_n - t_n|, running elementwise max of d_n^2 over the batch axis.
    d = []
    m = None
    for n in range(n_batch):
        dn = jnp.abs(x_ref[n].astype(jnp.float32) - t_ref[n].astype(jnp.float32))
        if needs_mask:
            dn = jnp.where(in_bounds, dn, 0.0)
        d.append(dn)
        w2 = dn * dn
        m = w2 if m is None else jnp.maximum(m, w2)

    # Pass 2: exp + softmax denominator (still purely elementwise, VPU/EUP only).
    e = []
    s = None
    for n in range(n_batch):
        en = jnp.exp(d[n] * d[n] - m)
        e.append(en)
        s = en if s is None else s + en

    # EUP approximate reciprocal + one Newton-Raphson step (~1e-8 rel. error).
    r = pl.reciprocal(s, approx=True)
    r = r * (2.0 - s * r)

    # Pass 3: accumulate.  |x*w - t*w| == d * w  since w >= 0.
    contrib = None
    for n in range(n_batch):
        dw = d[n] * (e[n] * r)
        c = dw if loss_type == "l1" else dw * dw
        contrib = c if contrib is None else contrib + c

    # Single accumulator read-modify-write per grid step.
    acc_ref[...] += contrib

    @pl.when(j == pl.num_programs(1) - 1)
    def _():
        # Per-lane partial sums (bounds accumulation error); combined in the wrapper.
        o_ref[...] = jnp.sum(acc_ref[...], axis=0, keepdims=True)


def _sublane_multiple(dtype):
    itemsize = jnp.dtype(dtype).itemsize
    return max(8, 32 // max(itemsize, 1))   # 8 for f32, 16 for bf16, 32 for int8


def _choose_rows(n_batch, n_rows, n_outer, dtype, *,
                 budget_bytes=20 * 1024 * 1024, max_rows=4096):
    """Pick the row-block size (multiple of the sublane quantum) from a VMEM budget."""
    sub = _sublane_multiple(dtype)
    itemsize = jnp.dtype(dtype).itemsize
    max_rows = max(sub, (max_rows // sub) * sub)
    # Working set per grid step, counted in (rows x 128) slabs:
    #   2 inputs x 2 pipeline buffers x n_batch slabs     (input dtype)
    #   1 f32 accumulator + ~(2*n_batch + 6) f32 temporaries (d_n, e_n, m, s, r, ...)
    bytes_per_row = 128 * (4 * n_batch * itemsize + (2 * n_batch + 7) * 4)
    cap = budget_bytes // bytes_per_row
    cap = max(sub, (cap // sub) * sub)
    need = -(-n_rows // n_outer)                       # ceil
    need = max(sub, -(-need // sub) * sub)             # round up to sublane multiple
    return max(sub, min(max_rows, cap, need))


def _n_outer_default():
    # Split into >1 independent super-blocks only where they can actually run in
    # parallel (v7x has 2 TensorCores/chip); on v5e/v6e the grid is a sequential loop
    # and extra super-blocks only add epilogue work.
    try:
        kind = jax.devices()[0].device_kind.lower()
    except Exception:
        return 1
    return 2 if "v7" in kind else 1


def focal_loss(inp, tgt, gamma=2.0, loss_type="l1", n_outer=None, max_rows=4096):
    """inp, tgt: same-shape arrays, batch on axis 0.  Returns the scalar mean loss (f32)."""
    del gamma  # stored by the PyTorch module but unused in its forward
    if loss_type not in ("l1", "l2"):
        raise ValueError(f"unsupported loss_type: {loss_type!r}")
    assert inp.shape == tgt.shape and inp.ndim >= 1
    n_batch = inp.shape[0]
    m_cols = math.prod(inp.shape[1:]) if inp.ndim > 1 else 1

    x = inp.reshape(n_batch, m_cols)
    t = tgt.reshape(n_batch, m_cols)

    # Lane packing: pad columns to a multiple of 128 only when ragged (zero pad => d = 0
    # => exact zero contribution), then take a free trailing-split reshape.
    n_rows = -(-m_cols // 128)
    m_pad = n_rows * 128
    if m_pad != m_cols:
        # TODO(synk): ragged M still costs one extra copy of the inputs; a fully
        # copy-free version would need a gather-style DMA for the tail columns.
        x = jnp.pad(x, ((0, 0), (0, m_pad - m_cols)))
        t = jnp.pad(t, ((0, 0), (0, m_pad - m_cols)))
    x = x.reshape(n_batch, n_rows, 128)
    t = t.reshape(n_batch, n_rows, 128)

    if n_outer is None:
        n_outer = _n_outer_default()
    rows = _choose_rows(n_batch, n_rows, n_outer, x.dtype, max_rows=max_rows)
    total_blocks = -(-n_rows // rows)

    # Finalize the super-block split so every grid block is at least partially in
    # bounds (no fully out-of-bounds DMAs): n_outer must divide the block count.
    n_outer = max(1, min(n_outer, total_blocks))
    if total_blocks % n_outer != 0:
        n_outer = 1
    n_inner = total_blocks // n_outer
    needs_mask = total_blocks * rows != n_rows   # only the last block is ragged

    kernel = functools.partial(
        _focal_loss_kernel, loss_type=loss_type, n_inner=n_inner, rows=rows,
        n_valid_rows=n_rows, needs_mask=needs_mask)

    in_map = lambda i, j, n_inner=n_inner: (0, i * n_inner + j, 0)

    out = pl.pallas_call(
        kernel,
        out_shape=jax.ShapeDtypeStruct((1, n_outer * 128), jnp.float32),
        grid_spec=pltpu.PrefetchScalarGridSpec(
            num_scalar_prefetch=0,
            grid=(n_outer, n_inner),
            in_specs=[
                pl.BlockSpec((n_batch, rows, 128), in_map),
                pl.BlockSpec((n_batch, rows, 128), in_map),
            ],
            out_specs=pl.BlockSpec((1, 128), lambda i, j: (0, i)),
            scratch_shapes=[pltpu.VMEM((rows, 128), jnp.float32)],
        ),
        compiler_params=pltpu.CompilerParams(
            # outer: independent super-blocks (shardable across v7x's 2 TensorCores);
            # inner: reduction axis (accumulator stays resident across it).
            dimension_semantics=("parallel", "arbitrary"),
            # Raise v5e's 16 MiB default scoped limit; stays under v7x's 64 MiB VMEM.
            vmem_limit_bytes=40 * 1024 * 1024,
        ),
    )(x, t)

    # Combine the lane-dense per-super-block partial sums; normalize by the TRUE count.
    return jnp.sum(out) / float(n_batch * m_cols)


def _focal_loss_ref(inp, tgt, loss_type="l1"):
    """Pure-JAX reference matching the PyTorch module."""
    d = jnp.abs(inp - tgt)
    w = jax.nn.softmax(d * d, axis=0)
    diff = inp * w - tgt * w
    if loss_type == "l1":
        return jnp.mean(jnp.abs(diff))
    return jnp.mean(diff * diff)


if __name__ == "__main__":
    key = jax.random.PRNGKey(0)
    k1, k2, k3, k4, k5, k6 = jax.random.split(key, 6)

    ok = True

    def check(name, out, ref):
        global ok
        if not jnp.allclose(out, ref, rtol=1e-5, atol=1e-6):
            ok = False
            print(f"MISMATCH ({name}): kernel={out} ref={ref}")

    # Small NCHW inputs consistent with an image-restoration loss.
    x = jax.random.normal(k1, (2, 4, 16, 16), dtype=jnp.float32)
    y = jax.random.normal(k2, (2, 4, 16, 16), dtype=jnp.float32)
    for lt in ("l1", "l2"):
        out = jax.block_until_ready(focal_loss(x, y, gamma=2.0, loss_type=lt))
        check(lt, out, _focal_loss_ref(x, y, loss_type=lt))

    # Ragged M (not a multiple of 128) -> exercises lane padding + in-kernel row mask.
    x2 = jax.random.normal(k3, (2, 3, 10, 10), dtype=jnp.float32)
    y2 = jax.random.normal(k4, (2, 3, 10, 10), dtype=jnp.float32)
    out2 = jax.block_until_ready(focal_loss(x2, y2, loss_type="l1"))
    check("ragged l1", out2, _focal_loss_ref(x2, y2, loss_type="l1"))

    # Multi super-block (n_outer=2) and multi-step reduction (small max_rows) paths.
    x3 = jax.random.normal(k5, (2, 8, 16, 16), dtype=jnp.float32)
    y3 = jax.random.normal(k6, (2, 8, 16, 16), dtype=jnp.float32)
    out3 = jax.block_until_ready(focal_loss(x3, y3, loss_type="l2", n_outer=2, max_rows=8))
    check("n_outer=2 l2", out3, _focal_loss_ref(x3, y3, loss_type="l2"))
    out4 = jax.block_until_ready(focal_loss(x3, y3, loss_type="l1", n_outer=1, max_rows=8))
    check("multi-step l1", out4, _focal_loss_ref(x3, y3, loss_type="l1"))

    if ok:
        print("KERNEL_OK")
</pallas_src>

<mosaic_0001>
module attributes {stable_mosaic.version = 11 : i64} {
  func.func @_focal_loss_kernel(%arg0: i32, %arg1: i32, %arg2: memref<2x8x128xf32, #tpu.memory_space<vmem>>, %arg3: memref<2x8x128xf32, #tpu.memory_space<vmem>>, %arg4: memref<1x128xf32, #tpu.memory_space<vmem>>, %arg5: memref<8x128xf32, #tpu.memory_space<vmem>>) attributes {dimension_semantics = [#tpu.dimension_semantics<parallel>, #tpu.dimension_semantics<arbitrary>], iteration_bounds = array<i64: 1, 1>, scalar_prefetch = 0 : i64, scratch_operands = 1 : i64, tpu.core_type = #tpu.core_type<tc>, window_params = [{transform_indices = @transform_0, window_bounds = array<i64: 2, 8, 128>}, {transform_indices = @transform_1, window_bounds = array<i64: 2, 8, 128>}, {transform_indices = @transform_2, window_bounds = array<i64: 1, 128>}]} {
    %c0_i32 = arith.constant 0 : i32
    %0 = arith.cmpi eq, %arg1, %c0_i32 : i32
    %1 = arith.extui %0 : i1 to i32
    %c0_i32_0 = arith.constant 0 : i32
    %2 = arith.cmpi ne, %1, %c0_i32_0 : i32
    scf.if %2 {
      %cst_17 = arith.constant 0.000000e+00 : f32
      %41 = vector.broadcast %cst_17 : f32 to vector<8x128xf32>
      %c0_18 = arith.constant 0 : index
      %c0_19 = arith.constant 0 : index
      %42 = vector.load %arg5[%c0_18, %c0_19] : memref<8x128xf32, #tpu.memory_space<vmem>>, vector<8x128xf32>
      tpu.vector_store %arg5[%c0_18, %c0_19], %41 {strides = array<i32>} : memref<8x128xf32, #tpu.memory_space<vmem>>, vector<8x128xf32>,
    } else {
    }
    %c0 = arith.constant 0 : index
    %c0_1 = arith.constant 0 : index
    %c0_2 = arith.constant 0 : index
    %3 = vector.load %arg2[%c0, %c0_1, %c0_2] : memref<2x8x128xf32, #tpu.memory_space<vmem>>, vector<1x8x128xf32>
    %4 = vector.shape_cast %3 : vector<1x8x128xf32> to vector<8x128xf32>
    %c0_3 = arith.constant 0 : index
    %c0_4 = arith.constant 0 : index
    %c0_5 = arith.constant 0 : index
    %5 = vector.load %arg3[%c0_3, %c0_4, %c0_5] : memref<2x8x128xf32, #tpu.memory_space<vmem>>, vector<1x8x128xf32>
    %6 = vector.shape_cast %5 : vector<1x8x128xf32> to vector<8x128xf32>
    %7 = arith.subf %4, %6 : vector<8x128xf32>
    %8 = math.absf %7 : vector<8x128xf32>
    %9 = arith.mulf %8, %8 : vector<8x128xf32>
    %c1 = arith.constant 1 : index
    %c0_6 = arith.constant 0 : index
    %c0_7 = arith.constant 0 : index
    %10 = vector.load %arg2[%c1, %c0_6, %c0_7] : memref<2x8x128xf32, #tpu.memory_space<vmem>>, vector<1x8x128xf32>
    %11 = vector.shape_cast %10 : vector<1x8x128xf32> to vector<8x128xf32>
    %c1_8 = arith.constant 1 : index
    %c0_9 = arith.constant 0 : index
    %c0_10 = arith.constant 0 : index
    %12 = vector.load %arg3[%c1_8, %c0_9, %c0_10] : memref<2x8x128xf32, #tpu.memory_space<vmem>>, vector<1x8x128xf32>
    %13 = vector.shape_cast %12 : vector<1x8x128xf32> to vector<8x128xf32>
    %14 = arith.subf %11, %13 : vector<8x128xf32>
    %15 = math.absf %14 : vector<8x128xf32>
    %16 = arith.mulf %15, %15 : vector<8x128xf32>
    %17 = arith.maximumf %9, %16 : vector<8x128xf32>
    %18 = arith.mulf %8, %8 : vector<8x128xf32>
    %19 = arith.subf %18, %17 : vector<8x128xf32>
    %20 = math.exp %19 : vector<8x128xf32>
    %21 = arith.mulf %15, %15 : vector<8x128xf32>
    %22 = arith.subf %21, %17 : vector<8x128xf32>
    %23 = math.exp %22 : vector<8x128xf32>
    %24 = arith.addf %20, %23 : vector<8x128xf32>
    %25 = tpu.reciprocal %24 {approx = true} : vector<8x128xf32> -> vector<8x128xf32>
    %26 = arith.mulf %24, %25 : vector<8x128xf32>
    %cst = arith.constant 2.000000e+00 : f32
    %27 = vector.broadcast %cst : f32 to vector<8x128xf32>
    %28 = arith.subf %27, %26 : vector<8x128xf32>
    %29 = arith.mulf %25, %28 : vector<8x128xf32>
    %30 = arith.mulf %20, %29 : vector<8x128xf32>
    %31 = arith.mulf %8, %30 : vector<8x128xf32>
    %32 = arith.mulf %23, %29 : vector<8x128xf32>
    %33 = arith.mulf %15, %32 : vector<8x128xf32>
    %34 = arith.addf %31, %33 : vector<8x128xf32>
    %c0_11 = arith.constant 0 : index
    %c0_12 = arith.constant 0 : index
    %35 = vector.load %arg5[%c0_11, %c0_12] : memref<8x128xf32, #tpu.memory_space<vmem>>, vector<8x128xf32>
    %36 = arith.addf %35, %34 : vector<8x128xf32>
    %c0_13 = arith.constant 0 : index
    %c0_14 = arith.constant 0 : index
    %37 = vector.load %arg5[%c0_13, %c0_14] : memref<8x128xf32, #tpu.memory_space<vmem>>, vector<8x128xf32>
    tpu.vector_store %arg5[%c0_13, %c0_14], %36 {strides = array<i32>} : memref<8x128xf32, #tpu.memory_space<vmem>>, vector<8x128xf32>,
    %c0_i32_15 = arith.constant 0 : i32
    %38 = arith.cmpi eq, %arg1, %c0_i32_15 : i32
    %39 = arith.extui %38 : i1 to i32
    %c0_i32_16 = arith.constant 0 : i32
    %40 = arith.cmpi ne, %39, %c0_i32_16 : i32
    scf.if %40 {
      %c0_17 = arith.constant 0 : index
      %c0_18 = arith.constant 0 : index
      %41 = vector.load %arg5[%c0_17, %c0_18] : memref<8x128xf32, #tpu.memory_space<vmem>>, vector<8x128xf32>
      %cst_19 = arith.constant dense<0.000000e+00> : vector<128xf32>
      %42 = vector.multi_reduction <add>, %41, %cst_19 [0] : vector<8x128xf32> to vector<128xf32>
      %43 = vector.shape_cast %42 : vector<128xf32> to vector<1x128xf32>
      %c0_20 = arith.constant 0 : index
      %c0_21 = arith.constant 0 : index
      %44 = vector.load %arg4[%c0_20, %c0_21] : memref<1x128xf32, #tpu.memory_space<vmem>>, vector<1x128xf32>
      tpu.vector_store %arg4[%c0_20, %c0_21], %43 {strides = array<i32>} : memref<1x128xf32, #tpu.memory_space<vmem>>, vector<1x128xf32>,
    } else {
    }
    return
  }
  func.func @transform_0(%arg0: i32, %arg1: i32) -> (i32, i32, i32) {
    %c1_i32 = arith.constant 1 : i32
    %0 = arith.muli %arg0, %c1_i32 : i32
    %1 = arith.addi %0, %arg1 : i32
    %c0_i32 = arith.constant 0 : i32
    %c0_i32_0 = arith.constant 0 : i32
    %c0_i32_1 = arith.constant 0 : i32
    return %c0_i32, %1, %c0_i32_0 : i32, i32, i32
  }
  func.func @transform_1(%arg0: i32, %arg1: i32) -> (i32, i32, i32) {
    %c1_i32 = arith.constant 1 : i32
    %0 = arith.muli %arg0, %c1_i32 : i32
    %1 = arith.addi %0, %arg1 : i32
    %c0_i32 = arith.constant 0 : i32
    %c0_i32_0 = arith.constant 0 : i32
    %c0_i32_1 = arith.constant 0 : i32
    return %c0_i32, %1, %c0_i32_0 : i32, i32, i32
  }
  func.func @transform_2(%arg0: i32, %arg1: i32) -> (i32, i32) {
    %c0_i32 = arith.constant 0 : i32
    %c0_i32_0 = arith.constant 0 : i32
    return %c0_i32, %arg0 : i32, i32
  }
}

</mosaic_0001>

<llo_original>
// kernel: tpu_custom_call.1
$region0: #{tpu_custom_call.1}
  #allocation0 [shape = 'u32[]', space=smem, size = 0x4, offset = 0x4, fixed_abs, tag = 'smem constant byte address 0x4 - core index']
  #allocation1 [shape = 'u32[144,128]{1,0:T(1,128)}', space=vmem, size = 0x12000, scoped, tag = 'internal scratch']
  #allocation2 [shape = 'f32[8,128]{1,0:T(8,128)}', space=vmem, size = 0x1000, scoped, tag = 'scratch operand']
  %s0 = inlined_call_operand.hbm [shape: f32[2,8,128], index: 0, kind: input, shape index: {}]
  %s1 = inlined_call_operand.hbm [shape: f32[2,8,128], index: 1, kind: input, shape index: {}]
  %s2 = inlined_call_operand.hbm [shape: f32[1,128], index: 2, kind: output, shape index: {}]
  %s3 = sld [smem:[#allocation0]]
  $region34: #{tpu_custom_call.1} parent=0
    _
  %s5 = ssub.s32 1, %s3
  %s6 = scalar_select 0, %s5, %s3
  $region1: #{tpu_custom_call.1} parent=0
    #allocation3 [shape = 'u8[8192]{0}', space=vmem, size = 0x2000, scoped, tag = 'input window, operand 0, single buffered']
    #allocation4 [shape = 's32[1]{0}', space=sflag, size = 0x4, scoped, tag = 'scoped memory for tpu_custom_call.1']
    #allocation5 [shape = 's32[1]{0}', space=sflag, size = 0x4, scoped, tag = 'scoped memory for tpu_custom_call.1']
    #allocation6 [shape = 'u8[8192]{0}', space=vmem, size = 0x2000, scoped, tag = 'input window, operand 1, single buffered']
    #allocation7 [shape = 's32[1]{0}', space=sflag, size = 0x4, scoped, tag = 'scoped memory for tpu_custom_call.1']
    #allocation8 [shape = 'u8[512]{0}', space=vmem, size = 0x400, scoped, tag = 'output window, operand 0, single buffered']
    %7 = vsyncpa [#allocation4], 0
    %8 = vsyncpa [#allocation7], 0
    %9 = vsyncpa [#allocation5], 0
    // Predicated region
    $region2: #{tpu_custom_call.1} parent=1 // pred_check
      _
    $region3: #{tpu_custom_call.1} parent=1 // pred_check_branch
      %11 = sbr.rel (0) target = $region5
    $region4: #{tpu_custom_call.1} parent=1 // pred_region
      %s12 = sadd.s32 0, 0
      %s14 = ssub.s32 256, 256
      %15 = vsyncadd [#allocation4], %s14
      %s16 = smul.addr %s12, 128
      %s17 = scalar_lea.hbm %s0, %s16
      %s18 = sshll.u32 [#allocation3], 4
      %s19 = int_to_ptr.vmem [resolvable:$true] %s18
      %24 = dma.hbm_to_vmem [thread:$0]  %s17, 256, %s19, [#allocation4], 128, 128, 8
    $region5: #{tpu_custom_call.1} parent=1 // pred_fallthru
      _
    // Predicated region
    $region6: #{tpu_custom_call.1} parent=1 // pred_check
      _
    $region7: #{tpu_custom_call.1} parent=1 // pred_check_branch
      %26 = sbr.rel (0) target = $region9
    $region8: #{tpu_custom_call.1} parent=1 // pred_region
      %s27 = sadd.s32 0, 0
      %s29 = ssub.s32 256, 256
      %30 = vsyncadd [#allocation7], %s29
      %s31 = smul.addr %s27, 128
      %s32 = scalar_lea.hbm %s1, %s31
      %s33 = sshll.u32 [#allocation6], 4
      %s34 = int_to_ptr.vmem [resolvable:$true] %s33
      %39 = dma.hbm_to_vmem [thread:$0]  %s32, 256, %s34, [#allocation7], 128, 128, 8
    $region9: #{tpu_custom_call.1} parent=1 // pred_fallthru
      _
    // Predicated region
    $region10: #{tpu_custom_call.1} parent=1 // pred_check
      _
    $region11: #{tpu_custom_call.1} parent=1 // pred_check_branch
      %41 = sbr.rel (0) target = $region13
    $region12: #{tpu_custom_call.1} parent=1 // pred_region
      %42 = dma.done [#allocation4], 256
    $region13: #{tpu_custom_call.1} parent=1 // pred_fallthru
      _
    // Predicated region
    $region14: #{tpu_custom_call.1} parent=1 // pred_check
      _
    $region15: #{tpu_custom_call.1} parent=1 // pred_check_branch
      %44 = sbr.rel (0) target = $region17
    $region16: #{tpu_custom_call.1} parent=1 // pred_region
      %45 = dma.done [#allocation7], 256
    $region17: #{tpu_custom_call.1} parent=1 // pred_fallthru
      _
    %s46 = sadd.s32 0, 0
    %s47 = sadd.s32 0, 0
    %p48 = scmp.eq.s32.totalorder 0, 0
    // Predicated region
    $region18: #{tpu_custom_call.1} parent=1 // pred_check
      %p49 = pneg %p48
    $region19: #{tpu_custom_call.1} parent=1 // pred_check_branch
      %51 = sbr.rel (%p49) target = $region21
    $region20: #{tpu_custom_call.1} parent=1 // pred_region
      %52 = vst [vmem:[#allocation2] sm:$0xff] 0.0
    $region21: #{tpu_custom_call.1} parent=1 // pred_fallthru
      _
    %v53 = vld [vmem:[#allocation3] sm:$0xff]
    %v54 = vld [vmem:[#allocation6] sm:$0xff]
    %v55 = vsub.f32 %v53, %v54
    %v56 = vand.u32 2147483647, %v55
    %v57 = vmul.f32 %v56, %v56
    %s58 = scalar_lea.vmem [#allocation3], 8
    %v59 = vld [vmem:[%s58] sm:$0xff]
    %s60 = scalar_lea.vmem [#allocation6], 8
    %v61 = vld [vmem:[%s60] sm:$0xff]
    %v62 = vsub.f32 %v59, %v61
    %v63 = vand.u32 2147483647, %v62
    %v64 = vmul.f32 %v63, %v63
    %v65 = vmax.f32 %v57, %v64
    %v66 = vsub.f32 %v57, %v65
    %v67 = vmul.f32 %v66, 1.442695
    %v68 = vpow.pop %v67
    %v69 = vsub.f32 %v64, %v65
    %v70 = vmul.f32 %v69, 1.442695
    %v71 = vpow.pop %v70
    %v72 = vadd.f32 %v68, %v71
    %v73 = vrcp.pop %v72
    %v74 = vmul.f32 %v72, %v73
    %v75 = vsub.f32 2.0, %v74
    %v76 = vmul.f32 %v73, %v75
    %v77 = vmul.f32 %v68, %v76
    %v78 = vmul.f32 %v56, %v77
    %v79 = vmul.f32 %v71, %v76
    %v80 = vmul.f32 %v63, %v79
    %v81 = vadd.f32 %v78, %v80
    %v82 = vld [vmem:[#allocation2] sm:$0xff]
    %v83 = vadd.f32 %v82, %v81
    %84 = vst [vmem:[#allocation2] sm:$0xff] %v83
    // Predicated region
    $region22: #{tpu_custom_call.1} parent=1 // pred_check
      %p85 = pneg %p48
    $region23: #{tpu_custom_call.1} parent=1 // pred_check_branch
      %87 = sbr.rel (%p85) target = $region25
    $region24: #{tpu_custom_call.1} parent=1 // pred_region
      %v88 = vld [vmem:[#allocation2] sm:$0xff]
      %v89 = vrot.slane %v88, 4
      %v90 = vadd.f32 %v88, %v89
      %v91 = vrot.slane %v90, 2
      %v92 = vadd.f32 %v90, %v91
      %v93 = vrot.slane %v92, 1
      %v94 = vadd.f32 %v92, %v93
      %95 = vst [vmem:[#allocation8] sm:$0x1] %v94
    $region25: #{tpu_custom_call.1} parent=1 // pred_fallthru
      _
    // Predicated region
    $region26: #{tpu_custom_call.1} parent=1 // pred_check
      _
    $region27: #{tpu_custom_call.1} parent=1 // pred_check_branch
      %97 = sbr.rel (0) target = $region29
    $region28: #{tpu_custom_call.1} parent=1 // pred_region
      %s99 = ssub.s32 16, 16
      %100 = vsyncadd [#allocation5], %s99
      %s102 = sshll.u32 [#allocation8], 4
      %s103 = int_to_ptr.vmem [resolvable:$true] %s102
      %105 = dma.vmem_to_hbm [thread:$0]  %s103, 16, %s2, [#allocation5]
    $region29: #{tpu_custom_call.1} parent=1 // pred_fallthru
      _
    // Predicated region
    $region30: #{tpu_custom_call.1} parent=1 // pred_check
      _
    $region31: #{tpu_custom_call.1} parent=1 // pred_check_branch
      %107 = sbr.rel (0) target = $region33
    $region32: #{tpu_custom_call.1} parent=1 // pred_region
      %108 = dma.done [#allocation5], 16
    $region33: #{tpu_custom_call.1} parent=1 // pred_fallthru
      _
    %109 = vsyncpa [#allocation4], 1
    %110 = vsyncpa [#allocation7], 1
    %111 = vsyncpa [#allocation5], 1

</llo_original>
